<compile_context>
chip_gen: v7x
topology: tpu7x:2x2x1
jax: 0.10.0
libtpu: 0.0.40
codegen_flags: <defaults>
</compile_context>

<pallas_src>
import jax
import jax.numpy as jnp
from jax import lax
from jax.experimental import pallas as pl
from jax.experimental.pallas import tpu as pltpu

H, W = 100, 100          # fixed by the module's `base` parameter
HP, WP = 104, 128        # sublane-aligned rows (8 | 104), lane-dense cols (128)


def decoder_kernel(v_ref, cbase_ref, cones_ref, w2_ref, out_ref):
    """One grid step == BT batch elements.

    v_ref    : VMEM (BT, 1, 1)   per-element scalar v
    cbase_ref: VMEM (HP, WP)     conv1(base), zero outside the 100x100 image
    cones_ref: VMEM (HP, WP)     conv1(ones), zero outside the 100x100 image
    w2_ref   : SMEM (9,)         conv2 weights, row-major
    out_ref  : VMEM (BT, HP, WP) lane-dense output block
    """
    BT = out_ref.shape[0]
    R = BT * HP

    v = v_ref[...]                       # (BT, 1, 1)
    cb = cbase_ref[...]                  # (HP, WP)
    co = cones_ref[...]                  # (HP, WP)

    # conv1 hoisted by linearity: relu(conv1(v + base)) = relu(v*conv1(1) + conv1(base))
    y1 = jnp.maximum(cb[None, :, :] + v * co[None, :, :], 0.0)   # (BT, HP, WP)

    # Fold batch into the sublane axis (HP % 8 == 0 -> layout-preserving reshape).
    # Padding rows/cols of every element are exactly zero (relu(0) == 0), so pure
    # rotations implement zero-padded 3x3 taps: every wrapped-in row/column is a
    # padding row/column and therefore zero.
    x = y1.reshape(R, WP)

    acc = None
    for di in (-1, 0, 1):
        xr = x if di == 0 else pltpu.roll(x, shift=(-di) % R, axis=0)
        for dj in (-1, 0, 1):
            tap = xr if dj == 0 else pltpu.roll(xr, shift=(-dj) % WP, axis=1)
            term = w2_ref[3 * (di + 1) + (dj + 1)] * tap
            acc = term if acc is None else acc + term

    out_ref[...] = jnp.maximum(acc, 0.0).reshape(BT, HP, WP)


def decoder_forward(v, mask, base, w1, w2, *, block_b=8):
    """v: (B,) f32, mask: unused, base: (100,100), w1/w2: (3,3). Returns (B,1,100,100)."""
    del mask  # unused in the PyTorch forward
    # TODO(synk): `self.temp = x` (training-time attribute stash) and the unused
    # `mask` argument have no effect on the returned output and are not modeled.
    B = v.shape[0]
    BT = min(block_b, B)
    Bp = pl.cdiv(B, BT) * BT

    # Batch-invariant precompute (linearity of zero-padded conv1):
    #   conv1(v*ones + base) = v*conv1(ones) + conv1(base)
    k1 = w1[None, None].astype(jnp.float32)                       # OIHW (1,1,3,3)
    c_base = lax.conv(base[None, None].astype(jnp.float32), k1, (1, 1), 'SAME')[0, 0]
    c_ones = lax.conv(jnp.ones((1, 1, H, W), jnp.float32), k1, (1, 1), 'SAME')[0, 0]
    pad2 = ((0, HP - H), (0, WP - W))
    c_base = jnp.pad(c_base, pad2)                                # (HP, WP), zero pad
    c_ones = jnp.pad(c_ones, pad2)                                # (HP, WP), zero pad

    v_pad = jnp.pad(v.astype(jnp.float32), (0, Bp - B)).reshape(Bp, 1, 1)
    w2_flat = w2.astype(jnp.float32).reshape(9)                   # 1-D SMEM (no (8,128) pad)

    out = pl.pallas_call(
        decoder_kernel,
        grid=(Bp // BT,),
        in_specs=[
            pl.BlockSpec((BT, 1, 1), lambda i: (i, 0, 0)),                 # v block
            pl.BlockSpec((HP, WP), lambda i: (0, 0)),                      # conv1(base)
            pl.BlockSpec((HP, WP), lambda i: (0, 0)),                      # conv1(ones)
            pl.BlockSpec(memory_space=pltpu.MemorySpace.SMEM),             # w2 (9,)
        ],
        out_specs=pl.BlockSpec((BT, HP, WP), lambda i: (i, 0, 0)),
        out_shape=jax.ShapeDtypeStruct((Bp, HP, WP), jnp.float32),
        compiler_params=pltpu.CompilerParams(dimension_semantics=("parallel",)),
    )(v_pad, c_base, c_ones, w2_flat)

    return out[:B, None, :H, :W]          # NCHW (B, 1, 100, 100)


def decoder_reference(v, base, w1, w2):
    """Pure-JAX reference mirroring the PyTorch forward (NCHW, cross-correlation)."""
    x = v[:, None, None, None] + base[None, None, :, :]          # (B,1,H,W)
    k1 = w1[None, None, :, :]                                    # OIHW (1,1,3,3)
    k2 = w2[None, None, :, :]
    x = jnp.maximum(lax.conv(x, k1, (1, 1), 'SAME'), 0.0)
    x = jnp.maximum(lax.conv(x, k2, (1, 1), 'SAME'), 0.0)
    return x


if __name__ == "__main__":
    key = jax.random.PRNGKey(0)
    kv, kw1, kw2, km = jax.random.split(key, 4)

    B = 2
    v = jax.random.normal(kv, (B,), dtype=jnp.float32)            # one scalar per batch element
    mask = jnp.ones((B,), dtype=jnp.float32)                      # unused by forward

    # Parameters: base is ones(100,100) per __init__; conv weights are small
    # deterministic random values (shape (out=1,in=1,3,3) squeezed to (3,3)).
    base = jnp.ones((H, W), dtype=jnp.float32)
    w1 = 0.2 * jax.random.normal(kw1, (3, 3), dtype=jnp.float32)
    w2 = 0.2 * jax.random.normal(kw2, (3, 3), dtype=jnp.float32)

    out = jax.jit(decoder_forward)(v, mask, base, w1, w2)
    out = jax.block_until_ready(out)

    ref = decoder_reference(v, base, w1, w2)
    assert out.shape == (B, 1, H, W), out.shape
    assert jnp.allclose(out, ref, atol=1e-4, rtol=1e-4), float(jnp.max(jnp.abs(out - ref)))

    print("KERNEL_OK")
</pallas_src>

<mosaic_0001>
module attributes {stable_mosaic.version = 11 : i64} {
  func.func @decoder_kernel(%arg0: i32, %arg1: memref<2x1x1xf32, #tpu.memory_space<vmem>>, %arg2: memref<104x128xf32, #tpu.memory_space<vmem>>, %arg3: memref<104x128xf32, #tpu.memory_space<vmem>>, %arg4: memref<9xf32, #tpu.memory_space<smem>>, %arg5: memref<2x104x128xf32, #tpu.memory_space<vmem>>) attributes {dimension_semantics = [#tpu.dimension_semantics<parallel>], iteration_bounds = array<i64: 1>, scalar_prefetch = 0 : i64, scratch_operands = 0 : i64, tpu.core_type = #tpu.core_type<tc>, window_params = [{transform_indices = @transform_0, window_bounds = array<i64: 2, 1, 1>}, {pipeline_mode = #tpu.pipeline_mode<synchronous>, transform_indices = @transform_1, window_bounds = array<i64: 104, 128>}, {pipeline_mode = #tpu.pipeline_mode<synchronous>, transform_indices = @transform_2, window_bounds = array<i64: 104, 128>}, {transform_indices = @transform_3, window_bounds = array<i64: 9>}, {transform_indices = @transform_4, window_bounds = array<i64: 2, 104, 128>}]} {
    %c0 = arith.constant 0 : index
    %c0_0 = arith.constant 0 : index
    %c0_1 = arith.constant 0 : index
    %0 = vector.load %arg1[%c0, %c0_0, %c0_1] : memref<2x1x1xf32, #tpu.memory_space<vmem>>, vector<2x1x1xf32>
    %c0_2 = arith.constant 0 : index
    %c0_3 = arith.constant 0 : index
    %1 = vector.load %arg2[%c0_2, %c0_3] : memref<104x128xf32, #tpu.memory_space<vmem>>, vector<104x128xf32>
    %c0_4 = arith.constant 0 : index
    %c0_5 = arith.constant 0 : index
    %2 = vector.load %arg3[%c0_4, %c0_5] : memref<104x128xf32, #tpu.memory_space<vmem>>, vector<104x128xf32>
    %3 = vector.shape_cast %1 : vector<104x128xf32> to vector<1x104x128xf32>
    %4 = vector.shape_cast %2 : vector<104x128xf32> to vector<1x104x128xf32>
    %5 = vector.broadcast %0 : vector<2x1x1xf32> to vector<2x104x128xf32>
    %6 = vector.broadcast %4 : vector<1x104x128xf32> to vector<2x104x128xf32>
    %7 = arith.mulf %5, %6 : vector<2x104x128xf32>
    %8 = vector.broadcast %3 : vector<1x104x128xf32> to vector<2x104x128xf32>
    %9 = arith.addf %8, %7 : vector<2x104x128xf32>
    %cst = arith.constant 0.000000e+00 : f32
    %10 = vector.broadcast %cst : f32 to vector<2x104x128xf32>
    %11 = arith.maximumf %9, %10 : vector<2x104x128xf32>
    %12 = vector.shape_cast %11 : vector<2x104x128xf32> to vector<208x128xf32>
    %c1_i32 = arith.constant 1 : i32
    %13 = tpu.dynamic_rotate %12 by %c1_i32 dim 0 : vector<208x128xf32>, i32 -> vector<208x128xf32>
    %c1_i32_6 = arith.constant 1 : i32
    %14 = tpu.dynamic_rotate %13 by %c1_i32_6 dim 1 : vector<208x128xf32>, i32 -> vector<208x128xf32>
    %c0_7 = arith.constant 0 : index
    %15 = memref.load %arg4[%c0_7] : memref<9xf32, #tpu.memory_space<smem>>
    %16 = vector.broadcast %15 : f32 to vector<208x128xf32>
    %17 = arith.mulf %16, %14 : vector<208x128xf32>
    %c1 = arith.constant 1 : index
    %18 = memref.load %arg4[%c1] : memref<9xf32, #tpu.memory_space<smem>>
    %19 = vector.broadcast %18 : f32 to vector<208x128xf32>
    %20 = arith.mulf %19, %13 : vector<208x128xf32>
    %21 = arith.addf %17, %20 : vector<208x128xf32>
    %c127_i32 = arith.constant 127 : i32
    %22 = tpu.dynamic_rotate %13 by %c127_i32 dim 1 : vector<208x128xf32>, i32 -> vector<208x128xf32>
    %c2 = arith.constant 2 : index
    %23 = memref.load %arg4[%c2] : memref<9xf32, #tpu.memory_space<smem>>
    %24 = vector.broadcast %23 : f32 to vector<208x128xf32>
    %25 = arith.mulf %24, %22 : vector<208x128xf32>
    %26 = arith.addf %21, %25 : vector<208x128xf32>
    %c1_i32_8 = arith.constant 1 : i32
    %27 = tpu.dynamic_rotate %12 by %c1_i32_8 dim 1 : vector<208x128xf32>, i32 -> vector<208x128xf32>
    %c3 = arith.constant 3 : index
    %28 = memref.load %arg4[%c3] : memref<9xf32, #tpu.memory_space<smem>>
    %29 = vector.broadcast %28 : f32 to vector<208x128xf32>
    %30 = arith.mulf %29, %27 : vector<208x128xf32>
    %31 = arith.addf %26, %30 : vector<208x128xf32>
    %c4 = arith.constant 4 : index
    %32 = memref.load %arg4[%c4] : memref<9xf32, #tpu.memory_space<smem>>
    %33 = vector.broadcast %32 : f32 to vector<208x128xf32>
    %34 = arith.mulf %33, %12 : vector<208x128xf32>
    %35 = arith.addf %31, %34 : vector<208x128xf32>
    %c127_i32_9 = arith.constant 127 : i32
    %36 = tpu.dynamic_rotate %12 by %c127_i32_9 dim 1 : vector<208x128xf32>, i32 -> vector<208x128xf32>
    %c5 = arith.constant 5 : index
    %37 = memref.load %arg4[%c5] : memref<9xf32, #tpu.memory_space<smem>>
    %38 = vector.broadcast %37 : f32 to vector<208x128xf32>
    %39 = arith.mulf %38, %36 : vector<208x128xf32>
    %40 = arith.addf %35, %39 : vector<208x128xf32>
    %c207_i32 = arith.constant 207 : i32
    %41 = tpu.dynamic_rotate %12 by %c207_i32 dim 0 : vector<208x128xf32>, i32 -> vector<208x128xf32>
    %c1_i32_10 = arith.constant 1 : i32
    %42 = tpu.dynamic_rotate %41 by %c1_i32_10 dim 1 : vector<208x128xf32>, i32 -> vector<208x128xf32>
    %c6 = arith.constant 6 : index
    %43 = memref.load %arg4[%c6] : memref<9xf32, #tpu.memory_space<smem>>
    %44 = vector.broadcast %43 : f32 to vector<208x128xf32>
    %45 = arith.mulf %44, %42 : vector<208x128xf32>
    %46 = arith.addf %40, %45 : vector<208x128xf32>
    %c7 = arith.constant 7 : index
    %47 = memref.load %arg4[%c7] : memref<9xf32, #tpu.memory_space<smem>>
    %48 = vector.broadcast %47 : f32 to vector<208x128xf32>
    %49 = arith.mulf %48, %41 : vector<208x128xf32>
    %50 = arith.addf %46, %49 : vector<208x128xf32>
    %c127_i32_11 = arith.constant 127 : i32
    %51 = tpu.dynamic_rotate %41 by %c127_i32_11 dim 1 : vector<208x128xf32>, i32 -> vector<208x128xf32>
    %c8 = arith.constant 8 : index
    %52 = memref.load %arg4[%c8] : memref<9xf32, #tpu.memory_space<smem>>
    %53 = vector.broadcast %52 : f32 to vector<208x128xf32>
    %54 = arith.mulf %53, %51 : vector<208x128xf32>
    %55 = arith.addf %50, %54 : vector<208x128xf32>
    %cst_12 = arith.constant 0.000000e+00 : f32
    %56 = vector.broadcast %cst_12 : f32 to vector<208x128xf32>
    %57 = arith.maximumf %55, %56 : vector<208x128xf32>
    %58 = vector.shape_cast %57 : vector<208x128xf32> to vector<2x104x128xf32>
    %c0_13 = arith.constant 0 : index
    %c0_14 = arith.constant 0 : index
    %c0_15 = arith.constant 0 : index
    %59 = vector.load %arg5[%c0_13, %c0_14, %c0_15] : memref<2x104x128xf32, #tpu.memory_space<vmem>>, vector<2x104x128xf32>
    tpu.vector_store %arg5[%c0_13, %c0_14, %c0_15], %58 {strides = array<i32>} : memref<2x104x128xf32, #tpu.memory_space<vmem>>, vector<2x104x128xf32>,
    return
  }
  func.func @transform_0(%arg0: i32) -> (i32, i32, i32) {
    %c0_i32 = arith.constant 0 : i32
    %c0_i32_0 = arith.constant 0 : i32
    %c0_i32_1 = arith.constant 0 : i32
    return %arg0, %c0_i32, %c0_i32_0 : i32, i32, i32
  }
  func.func @transform_1(%arg0: i32) -> (i32, i32) {
    %c0_i32 = arith.constant 0 : i32
    %c0_i32_0 = arith.constant 0 : i32
    %c0_i32_1 = arith.constant 0 : i32
    return %c0_i32, %c0_i32_0 : i32, i32
  }
  func.func @transform_2(%arg0: i32) -> (i32, i32) {
    %c0_i32 = arith.constant 0 : i32
    %c0_i32_0 = arith.constant 0 : i32
    %c0_i32_1 = arith.constant 0 : i32
    return %c0_i32, %c0_i32_0 : i32, i32
  }
  func.func @transform_3(%arg0: i32) -> i32 {
    %c0_i32 = arith.constant 0 : i32
    %c0_i32_0 = arith.constant 0 : i32
    return %c0_i32 : i32
  }
  func.func @transform_4(%arg0: i32) -> (i32, i32, i32) {
    %c0_i32 = arith.constant 0 : i32
    %c0_i32_0 = arith.constant 0 : i32
    %c0_i32_1 = arith.constant 0 : i32
    return %arg0, %c0_i32, %c0_i32_0 : i32, i32, i32
  }
}

</mosaic_0001>

<llo_original>
// kernel: decoder_forward.1
$region0: #{decoder_forward.1}
  #allocation0 [shape = 'u32[]', space=smem, size = 0x4, offset = 0x4, fixed_abs, tag = 'smem constant byte address 0x4 - core index']
  #allocation1 [shape = 'u32[144,128]{1,0:T(1,128)}', space=vmem, size = 0x12000, scoped, tag = 'internal scratch']
  %s0 = inlined_call_operand.vmem [shape: f32[2,1,1], index: 0, kind: input, shape index: {}]
  %s1 = inlined_call_operand.vmem [shape: f32[104,128], index: 1, kind: input, shape index: {}]
  %s2 = inlined_call_operand.vmem [shape: f32[104,128], index: 2, kind: input, shape index: {}]
  %s3 = inlined_call_operand.vmem [shape: f32[9], index: 3, kind: input, shape index: {}]
  %s4 = inlined_call_operand.vmem [shape: f32[2,104,128], index: 4, kind: output, shape index: {}]
  %s5 = sld [smem:[#allocation0]]
  $region30: #{decoder_forward.1} parent=0
    _
  %s7 = ssub.s32 1, %s5
  %s8 = scalar_select 0, %s7, %s5
  $region1: #{decoder_forward.1} parent=0
    #allocation2 [shape = 'u8[512]{0}', space=smem, size = 0x200, scoped, tag = 'input window, operand 3, single buffered']
    #allocation3 [shape = 's32[1]{0}', space=sflag, size = 0x4, scoped, tag = 'scoped memory for decoder_forward.1']
    %9 = vsyncpa [#allocation3], 0
    // Predicated region
    $region2: #{decoder_forward.1} parent=1 // pred_check
      _
    $region3: #{decoder_forward.1} parent=1 // pred_check_branch
      %11 = sbr.rel (0) target = $region5
    $region4: #{decoder_forward.1} parent=1 // pred_region
      _
    $region5: #{decoder_forward.1} parent=1 // pred_fallthru
      _
    // Predicated region
    $region6: #{decoder_forward.1} parent=1 // pred_check
      _
    $region7: #{decoder_forward.1} parent=1 // pred_check_branch
      %13 = sbr.rel (0) target = $region9
    $region8: #{decoder_forward.1} parent=1 // pred_region
      _
    $region9: #{decoder_forward.1} parent=1 // pred_fallthru
      _
    // Predicated region
    $region10: #{decoder_forward.1} parent=1 // pred_check
      _
    $region11: #{decoder_forward.1} parent=1 // pred_check_branch
      %15 = sbr.rel (0) target = $region13
    $region12: #{decoder_forward.1} parent=1 // pred_region
      _
    $region13: #{decoder_forward.1} parent=1 // pred_fallthru
      _
    // Predicated region
    $region14: #{decoder_forward.1} parent=1 // pred_check
      _
    $region15: #{decoder_forward.1} parent=1 // pred_check_branch
      %17 = sbr.rel (0) target = $region17
    $region16: #{decoder_forward.1} parent=1 // pred_region
      %s19 = ssub.s32 16, 16
      %20 = vsyncadd [#allocation3], %s19
      %s22 = sshll.u32 %s3, 4
      %s23 = int_to_ptr.vmem [resolvable:$true] %s22
      %25 = dma.vmem_to_smem %s23, 16, [#allocation2], [#allocation3]
    $region17: #{decoder_forward.1} parent=1 // pred_fallthru
      _
    // Predicated region
    $region18: #{decoder_forward.1} parent=1 // pred_check
      _
    $region19: #{decoder_forward.1} parent=1 // pred_check_branch
      %27 = sbr.rel (0) target = $region21
    $region20: #{decoder_forward.1} parent=1 // pred_region
      %28 = dma.done [#allocation3], 16
    $region21: #{decoder_forward.1} parent=1 // pred_fallthru
      _
    %29 = sfence
    %v30 = vld [vmem:[%s0] sm:$0x1]
    %v31 = vld [vmem:[%s0 + $0x1] sm:$0x1]
    %v32 = vld [vmem:[%s1] sm:$0xff]
    %v33 = vld [vmem:[%s1 + $0x8] sm:$0xff]
    %v34 = vld [vmem:[%s1 + $0x10] sm:$0xff]
    %v35 = vld [vmem:[%s1 + $0x18] sm:$0xff]
    %v36 = vld [vmem:[%s1 + $0x20] sm:$0xff]
    %v37 = vld [vmem:[%s1 + $0x28] sm:$0xff]
    %v38 = vld [vmem:[%s1 + $0x30] sm:$0xff]
    %v39 = vld [vmem:[%s1 + $0x38] sm:$0xff]
    %v40 = vld [vmem:[%s1 + $0x40] sm:$0xff]
    %v41 = vld [vmem:[%s1 + $0x48] sm:$0xff]
    %v42 = vld [vmem:[%s1 + $0x50] sm:$0xff]
    %v43 = vld [vmem:[%s1 + $0x58] sm:$0xff]
    %v44 = vld [vmem:[%s1 + $0x60] sm:$0xff]
    %v45 = vld [vmem:[%s2] sm:$0xff]
    %v46 = vld [vmem:[%s2 + $0x8] sm:$0xff]
    %v47 = vld [vmem:[%s2 + $0x10] sm:$0xff]
    %v48 = vld [vmem:[%s2 + $0x18] sm:$0xff]
    %v49 = vld [vmem:[%s2 + $0x20] sm:$0xff]
    %v50 = vld [vmem:[%s2 + $0x28] sm:$0xff]
    %v51 = vld [vmem:[%s2 + $0x30] sm:$0xff]
    %v52 = vld [vmem:[%s2 + $0x38] sm:$0xff]
    %v53 = vld [vmem:[%s2 + $0x40] sm:$0xff]
    %v54 = vld [vmem:[%s2 + $0x48] sm:$0xff]
    %v55 = vld [vmem:[%s2 + $0x50] sm:$0xff]
    %v56 = vld [vmem:[%s2 + $0x58] sm:$0xff]
    %v57 = vld [vmem:[%s2 + $0x60] sm:$0xff]
    %v60 = vlaneseq
    %v61 = vshrl.u32 %v60, 7
    %v62 = vsub.s32 0, %v61
    %v63 = vrot.slane %v30, %v62
    %v64 = vlaneseq
    %v65 = vshrl.u32 %v64, 7
    %v66 = vsub.s32 0, %v65
    %v67 = vrot.slane %v31, %v66
    %68 = vset.pattern.permute.xlu0 0
    %69 = vperm.xlu0 %68, %v63
    %v70 = vpop.permute.xlu0 %69
    %72 = vset.pattern.permute.xlu0 0
    %73 = vperm.xlu0 %72, %v67
    %v74 = vpop.permute.xlu0 %73
    %v76 = vmul.f32 %v70, %v45
    %v77 = vmul.f32 %v70, %v46
    %v78 = vmul.f32 %v70, %v47
    %v79 = vmul.f32 %v70, %v48
    %v80 = vmul.f32 %v70, %v49
    %v81 = vmul.f32 %v70, %v50
    %v82 = vmul.f32 %v70, %v51
    %v83 = vmul.f32 %v70, %v52
    %v84 = vmul.f32 %v70, %v53
    %v85 = vmul.f32 %v70, %v54
    %v86 = vmul.f32 %v70, %v55
    %v87 = vmul.f32 %v70, %v56
    %v88 = vmul.f32 %v70, %v57
    %v89 = vmul.f32 %v74, %v45
    %v90 = vmul.f32 %v74, %v46
    %v91 = vmul.f32 %v74, %v47
    %v92 = vmul.f32 %v74, %v48
    %v93 = vmul.f32 %v74, %v49
    %v94 = vmul.f32 %v74, %v50
    %v95 = vmul.f32 %v74, %v51
    %v96 = vmul.f32 %v74, %v52
    %v97 = vmul.f32 %v74, %v53
    %v98 = vmul.f32 %v74, %v54
    %v99 = vmul.f32 %v74, %v55
    %v100 = vmul.f32 %v74, %v56
    %v101 = vmul.f32 %v74, %v57
    %v102 = vadd.f32 %v32, %v76
    %v103 = vadd.f32 %v33, %v77
    %v104 = vadd.f32 %v34, %v78
    %v105 = vadd.f32 %v35, %v79
    %v106 = vadd.f32 %v36, %v80
    %v107 = vadd.f32 %v37, %v81
    %v108 = vadd.f32 %v38, %v82
    %v109 = vadd.f32 %v39, %v83
    %v110 = vadd.f32 %v40, %v84
    %v111 = vadd.f32 %v41, %v85
    %v112 = vadd.f32 %v42, %v86
    %v113 = vadd.f32 %v43, %v87
    %v114 = vadd.f32 %v44, %v88
    %v115 = vadd.f32 %v32, %v89
    %v116 = vadd.f32 %v33, %v90
    %v117 = vadd.f32 %v34, %v91
    %v118 = vadd.f32 %v35, %v92
    %v119 = vadd.f32 %v36, %v93
    %v120 = vadd.f32 %v37, %v94
    %v121 = vadd.f32 %v38, %v95
    %v122 = vadd.f32 %v39, %v96
    %v123 = vadd.f32 %v40, %v97
    %v124 = vadd.f32 %v41, %v98
    %v125 = vadd.f32 %v42, %v99
    %v126 = vadd.f32 %v43, %v100
    %v127 = vadd.f32 %v44, %v101
    %v128 = vmax.f32 %v102, 0.0
    %v129 = vmax.f32 %v103, 0.0
    %v130 = vmax.f32 %v104, 0.0
    %v131 = vmax.f32 %v105, 0.0
    %v132 = vmax.f32 %v106, 0.0
    %v133 = vmax.f32 %v107, 0.0
    %v134 = vmax.f32 %v108, 0.0
    %v135 = vmax.f32 %v109, 0.0
    %v136 = vmax.f32 %v110, 0.0
    %v137 = vmax.f32 %v111, 0.0
    %v138 = vmax.f32 %v112, 0.0
    %v139 = vmax.f32 %v113, 0.0
    %v140 = vmax.f32 %v114, 0.0
    %v141 = vmax.f32 %v115, 0.0
    %v142 = vmax.f32 %v116, 0.0
    %v143 = vmax.f32 %v117, 0.0
    %v144 = vmax.f32 %v118, 0.0
    %v145 = vmax.f32 %v119, 0.0
    %v146 = vmax.f32 %v120, 0.0
    %v147 = vmax.f32 %v121, 0.0
    %v148 = vmax.f32 %v122, 0.0
    %v149 = vmax.f32 %v123, 0.0
    %v150 = vmax.f32 %v124, 0.0
    %v151 = vmax.f32 %v125, 0.0
    %v152 = vmax.f32 %v126, 0.0
    %v153 = vmax.f32 %v127, 0.0
    %v154 = vrot.slane %v128, 7
    %v155 = vrot.slane %v129, 7
    %v156 = vrot.slane %v130, 7
    %v157 = vrot.slane %v131, 7
    %v158 = vrot.slane %v132, 7
    %v159 = vrot.slane %v133, 7
    %v160 = vrot.slane %v134, 7
    %v161 = vrot.slane %v135, 7
    %v162 = vrot.slane %v136, 7
    %v163 = vrot.slane %v137, 7
    %v164 = vrot.slane %v138, 7
    %v165 = vrot.slane %v139, 7
    %v166 = vrot.slane %v140, 7
    %v167 = vrot.slane %v141, 7
    %v168 = vrot.slane %v142, 7
    %v169 = vrot.slane %v143, 7
    %v170 = vrot.slane %v144, 7
    %v171 = vrot.slane %v145, 7
    %v172 = vrot.slane %v146, 7
    %v173 = vrot.slane %v147, 7
    %v174 = vrot.slane %v148, 7
    %v175 = vrot.slane %v149, 7
    %v176 = vrot.slane %v150, 7
    %v177 = vrot.slane %v151, 7
    %v178 = vrot.slane %v152, 7
    %v179 = vrot.slane %v153, 7
    %v180 = vlaneseq
    %v181 = vshrl.u32 %v180, 7
    %vm182 = vcmp.lt.s32.totalorder %v181, 1
    %v183 = vsel %vm182, %v178, %v179
    %v184 = vsel %vm182, %v177, %v178
    %v185 = vsel %vm182, %v176, %v177
    %v186 = vsel %vm182, %v175, %v176
    %v187 = vsel %vm182, %v174, %v175
    %v188 = vsel %vm182, %v173, %v174
    %v189 = vsel %vm182, %v172, %v173
    %v190 = vsel %vm182, %v171, %v172
    %v191 = vsel %vm182, %v170, %v171
    %v192 = vsel %vm182, %v169, %v170
    %v193 = vsel %vm182, %v168, %v169
    %v194 = vsel %vm182, %v167, %v168
    %v195 = vsel %vm182, %v166, %v167
    %v196 = vsel %vm182, %v165, %v166
    %v197 = vsel %vm182, %v164, %v165
    %v198 = vsel %vm182, %v163, %v164
    %v199 = vsel %vm182, %v162, %v163
    %v200 = vsel %vm182, %v161, %v162
    %v201 = vsel %vm182, %v160, %v161
    %v202 = vsel %vm182, %v159, %v160
    %v203 = vsel %vm182, %v158, %v159
    %v204 = vsel %vm182, %v157, %v158
    %v205 = vsel %vm182, %v156, %v157
    %v206 = vsel %vm182, %v155, %v156
    %v207 = vsel %vm182, %v154, %v155
    %v208 = vsel %vm182, %v179, %v154
    %209 = vrot.lane.b32.xlu0 %v208, 1
    %v210 = vpop.permute.xlu0 %209
    %211 = vrot.lane.b32.xlu0 %v207, 1
    %v212 = vpop.permute.xlu0 %211
    %213 = vrot.lane.b32.xlu0 %v206, 1
    %v214 = vpop.permute.xlu0 %213
    %215 = vrot.lane.b32.xlu0 %v205, 1
    %v216 = vpop.permute.xlu0 %215
    %217 = vrot.lane.b32.xlu0 %v204, 1
    %v218 = vpop.permute.xlu0 %217
    %219 = vrot.lane.b32.xlu0 %v203, 1
    %v220 = vpop.permute.xlu0 %219
    %221 = vrot.lane.b32.xlu0 %v202, 1
    %v222 = vpop.permute.xlu0 %221
    %223 = vrot.lane.b32.xlu0 %v201, 1
    %v224 = vpop.permute.xlu0 %223
    %225 = vrot.lane.b32.xlu0 %v200, 1
    %v226 = vpop.permute.xlu0 %225
    %227 = vrot.lane.b32.xlu0 %v199, 1
    %v228 = vpop.permute.xlu0 %227
    %229 = vrot.lane.b32.xlu0 %v198, 1
    %v230 = vpop.permute.xlu0 %229
    %231 = vrot.lane.b32.xlu0 %v197, 1
    %v232 = vpop.permute.xlu0 %231
    %233 = vrot.lane.b32.xlu0 %v196, 1
    %v234 = vpop.permute.xlu0 %233
    %235 = vrot.lane.b32.xlu0 %v195, 1
    %v236 = vpop.permute.xlu0 %235
    %237 = vrot.lane.b32.xlu0 %v194, 1
    %v238 = vpop.permute.xlu0 %237
    %239 = vrot.lane.b32.xlu0 %v193, 1
    %v240 = vpop.permute.xlu0 %239
    %241 = vrot.lane.b32.xlu0 %v192, 1
    %v242 = vpop.permute.xlu0 %241
    %243 = vrot.lane.b32.xlu0 %v191, 1
    %v244 = vpop.permute.xlu0 %243
    %245 = vrot.lane.b32.xlu0 %v190, 1
    %v246 = vpop.permute.xlu0 %245
    %247 = vrot.lane.b32.xlu0 %v189, 1
    %v248 = vpop.permute.xlu0 %247
    %249 = vrot.lane.b32.xlu0 %v188, 1
    %v250 = vpop.permute.xlu0 %249
    %251 = vrot.lane.b32.xlu0 %v187, 1
    %v252 = vpop.permute.xlu0 %251
    %253 = vrot.lane.b32.xlu0 %v186, 1
    %v254 = vpop.permute.xlu0 %253
    %255 = vrot.lane.b32.xlu0 %v185, 1
    %v256 = vpop.permute.xlu0 %255
    %257 = vrot.lane.b32.xlu0 %v184, 1
    %v258 = vpop.permute.xlu0 %257
    %259 = vrot.lane.b32.xlu0 %v183, 1
    %v260 = vpop.permute.xlu0 %259
    %s261 = sld [smem:[#allocation2]]
    %v262 = vstv %s261
    %v263 = vmul.f32 %v262, %v210
    %v264 = vmul.f32 %v262, %v212
    %v265 = vmul.f32 %v262, %v214
    %v266 = vmul.f32 %v262, %v216
    %v267 = vmul.f32 %v262, %v218
    %v268 = vmul.f32 %v262, %v220
    %v269 = vmul.f32 %v262, %v222
    %v270 = vmul.f32 %v262, %v224
    %v271 = vmul.f32 %v262, %v226
    %v272 = vmul.f32 %v262, %v228
    %v273 = vmul.f32 %v262, %v230
    %v274 = vmul.f32 %v262, %v232
    %v275 = vmul.f32 %v262, %v234
    %v276 = vmul.f32 %v262, %v236
    %v277 = vmul.f32 %v262, %v238
    %v278 = vmul.f32 %v262, %v240
    %v279 = vmul.f32 %v262, %v242
    %v280 = vmul.f32 %v262, %v244
    %v281 = vmul.f32 %v262, %v246
    %v282 = vmul.f32 %v262, %v248
    %v283 = vmul.f32 %v262, %v250
    %v284 = vmul.f32 %v262, %v252
    %v285 = vmul.f32 %v262, %v254
    %v286 = vmul.f32 %v262, %v256
    %v287 = vmul.f32 %v262, %v258
    %v288 = vmul.f32 %v262, %v260
    %s289 = sld [smem:[#allocation2 + $0x1]]
    %v290 = vstv %s289
    %v291 = vmul.f32 %v290, %v208
    %v292 = vmul.f32 %v290, %v207
    %v293 = vmul.f32 %v290, %v206
    %v294 = vmul.f32 %v290, %v205
    %v295 = vmul.f32 %v290, %v204
    %v296 = vmul.f32 %v290, %v203
    %v297 = vmul.f32 %v290, %v202
    %v298 = vmul.f32 %v290, %v201
    %v299 = vmul.f32 %v290, %v200
    %v300 = vmul.f32 %v290, %v199
    %v301 = vmul.f32 %v290, %v198
    %v302 = vmul.f32 %v290, %v197
    %v303 = vmul.f32 %v290, %v196
    %v304 = vmul.f32 %v290, %v195
    %v305 = vmul.f32 %v290, %v194
    %v306 = vmul.f32 %v290, %v193
    %v307 = vmul.f32 %v290, %v192
    %v308 = vmul.f32 %v290, %v191
    %v309 = vmul.f32 %v290, %v190
    %v310 = vmul.f32 %v290, %v189
    %v311 = vmul.f32 %v290, %v188
    %v312 = vmul.f32 %v290, %v187
    %v313 = vmul.f32 %v290, %v186
    %v314 = vmul.f32 %v290, %v185
    %v315 = vmul.f32 %v290, %v184
    %v316 = vmul.f32 %v290, %v183
    %v317 = vadd.f32 %v263, %v291
    %v318 = vadd.f32 %v264, %v292
    %v319 = vadd.f32 %v265, %v293
    %v320 = vadd.f32 %v266, %v294
    %v321 = vadd.f32 %v267, %v295
    %v322 = vadd.f32 %v268, %v296
    %v323 = vadd.f32 %v269, %v297
    %v324 = vadd.f32 %v270, %v298
    %v325 = vadd.f32 %v271, %v299
    %v326 = vadd.f32 %v272, %v300
    %v327 = vadd.f32 %v273, %v301
    %v328 = vadd.f32 %v274, %v302
    %v329 = vadd.f32 %v275, %v303
    %v330 = vadd.f32 %v276, %v304
    %v331 = vadd.f32 %v277, %v305
    %v332 = vadd.f32 %v278, %v306
    %v333 = vadd.f32 %v279, %v307
    %v334 = vadd.f32 %v280, %v308
    %v335 = vadd.f32 %v281, %v309
    %v336 = vadd.f32 %v282, %v310
    %v337 = vadd.f32 %v283, %v311
    %v338 = vadd.f32 %v284, %v312
    %v339 = vadd.f32 %v285, %v313
    %v340 = vadd.f32 %v286, %v314
    %v341 = vadd.f32 %v287, %v315
    %v342 = vadd.f32 %v288, %v316
    %343 = vrot.lane.b32.xlu0 %v208, 127
    %v344 = vpop.permute.xlu0 %343
    %345 = vrot.lane.b32.xlu0 %v207, 127
    %v346 = vpop.permute.xlu0 %345
    %347 = vrot.lane.b32.xlu0 %v206, 127
    %v348 = vpop.permute.xlu0 %347
    %349 = vrot.lane.b32.xlu0 %v205, 127
    %v350 = vpop.permute.xlu0 %349
    %351 = vrot.lane.b32.xlu0 %v204, 127
    %v352 = vpop.permute.xlu0 %351
    %353 = vrot.lane.b32.xlu0 %v203, 127
    %v354 = vpop.permute.xlu0 %353
    %355 = vrot.lane.b32.xlu0 %v202, 127
    %v356 = vpop.permute.xlu0 %355
    %357 = vrot.lane.b32.xlu0 %v201, 127
    %v358 = vpop.permute.xlu0 %357
    %359 = vrot.lane.b32.xlu0 %v200, 127
    %v360 = vpop.permute.xlu0 %359
    %361 = vrot.lane.b32.xlu0 %v199, 127
    %v362 = vpop.permute.xlu0 %361
    %363 = vrot.lane.b32.xlu0 %v198, 127
    %v364 = vpop.permute.xlu0 %363
    %365 = vrot.lane.b32.xlu0 %v197, 127
    %v366 = vpop.permute.xlu0 %365
    %367 = vrot.lane.b32.xlu0 %v196, 127
    %v368 = vpop.permute.xlu0 %367
    %369 = vrot.lane.b32.xlu0 %v195, 127
    %v370 = vpop.permute.xlu0 %369
    %371 = vrot.lane.b32.xlu0 %v194, 127
    %v372 = vpop.permute.xlu0 %371
    %373 = vrot.lane.b32.xlu0 %v193, 127
    %v374 = vpop.permute.xlu0 %373
    %375 = vrot.lane.b32.xlu0 %v192, 127
    %v376 = vpop.permute.xlu0 %375
    %377 = vrot.lane.b32.xlu0 %v191, 127
    %v378 = vpop.permute.xlu0 %377
    %379 = vrot.lane.b32.xlu0 %v190, 127
    %v380 = vpop.permute.xlu0 %379
    %381 = vrot.lane.b32.xlu0 %v189, 127
    %v382 = vpop.permute.xlu0 %381
    %383 = vrot.lane.b32.xlu0 %v188, 127
    %v384 = vpop.permute.xlu0 %383
    %385 = vrot.lane.b32.xlu0 %v187, 127
    %v386 = vpop.permute.xlu0 %385
    %387 = vrot.lane.b32.xlu0 %v186, 127
    %v388 = vpop.permute.xlu0 %387
    %389 = vrot.lane.b32.xlu0 %v185, 127
    %v390 = vpop.permute.xlu0 %389
    %391 = vrot.lane.b32.xlu0 %v184, 127
    %v392 = vpop.permute.xlu0 %391
    %393 = vrot.lane.b32.xlu0 %v183, 127
    %v394 = vpop.permute.xlu0 %393
    %s395 = sld [smem:[#allocation2 + $0x2]]
    %v396 = vstv %s395
    %v397 = vmul.f32 %v396, %v344
    %v398 = vmul.f32 %v396, %v346
    %v399 = vmul.f32 %v396, %v348
    %v400 = vmul.f32 %v396, %v350
    %v401 = vmul.f32 %v396, %v352
    %v402 = vmul.f32 %v396, %v354
    %v403 = vmul.f32 %v396, %v356
    %v404 = vmul.f32 %v396, %v358
    %v405 = vmul.f32 %v396, %v360
    %v406 = vmul.f32 %v396, %v362
    %v407 = vmul.f32 %v396, %v364
    %v408 = vmul.f32 %v396, %v366
    %v409 = vmul.f32 %v396, %v368
    %v410 = vmul.f32 %v396, %v370
    %v411 = vmul.f32 %v396, %v372
    %v412 = vmul.f32 %v396, %v374
    %v413 = vmul.f32 %v396, %v376
    %v414 = vmul.f32 %v396, %v378
    %v415 = vmul.f32 %v396, %v380
    %v416 = vmul.f32 %v396, %v382
    %v417 = vmul.f32 %v396, %v384
    %v418 = vmul.f32 %v396, %v386
    %v419 = vmul.f32 %v396, %v388
    %v420 = vmul.f32 %v396, %v390
    %v421 = vmul.f32 %v396, %v392
    %v422 = vmul.f32 %v396, %v394
    %v423 = vadd.f32 %v317, %v397
    %v424 = vadd.f32 %v318, %v398
    %v425 = vadd.f32 %v319, %v399
    %v426 = vadd.f32 %v320, %v400
    %v427 = vadd.f32 %v321, %v401
    %v428 = vadd.f32 %v322, %v402
    %v429 = vadd.f32 %v323, %v403
    %v430 = vadd.f32 %v324, %v404
    %v431 = vadd.f32 %v325, %v405
    %v432 = vadd.f32 %v326, %v406
    %v433 = vadd.f32 %v327, %v407
    %v434 = vadd.f32 %v328, %v408
    %v435 = vadd.f32 %v329, %v409
    %v436 = vadd.f32 %v330, %v410
    %v437 = vadd.f32 %v331, %v411
    %v438 = vadd.f32 %v332, %v412
    %v439 = vadd.f32 %v333, %v413
    %v440 = vadd.f32 %v334, %v414
    %v441 = vadd.f32 %v335, %v415
    %v442 = vadd.f32 %v336, %v416
    %v443 = vadd.f32 %v337, %v417
    %v444 = vadd.f32 %v338, %v418
    %v445 = vadd.f32 %v339, %v419
    %v446 = vadd.f32 %v340, %v420
    %v447 = vadd.f32 %v341, %v421
    %v448 = vadd.f32 %v342, %v422
    %449 = vrot.lane.b32.xlu0 %v128, 1
    %v450 = vpop.permute.xlu0 %449
    %451 = vrot.lane.b32.xlu0 %v129, 1
    %v452 = vpop.permute.xlu0 %451
    %453 = vrot.lane.b32.xlu0 %v130, 1
    %v454 = vpop.permute.xlu0 %453
    %455 = vrot.lane.b32.xlu0 %v131, 1
    %v456 = vpop.permute.xlu0 %455
    %457 = vrot.lane.b32.xlu0 %v132, 1
    %v458 = vpop.permute.xlu0 %457
    %459 = vrot.lane.b32.xlu0 %v133, 1
    %v460 = vpop.permute.xlu0 %459
    %461 = vrot.lane.b32.xlu0 %v134, 1
    %v462 = vpop.permute.xlu0 %461
    %463 = vrot.lane.b32.xlu0 %v135, 1
    %v464 = vpop.permute.xlu0 %463
    %465 = vrot.lane.b32.xlu0 %v136, 1
    %v466 = vpop.permute.xlu0 %465
    %467 = vrot.lane.b32.xlu0 %v137, 1
    %v468 = vpop.permute.xlu0 %467
    %469 = vrot.lane.b32.xlu0 %v138, 1
    %v470 = vpop.permute.xlu0 %469
    %471 = vrot.lane.b32.xlu0 %v139, 1
    %v472 = vpop.permute.xlu0 %471
    %473 = vrot.lane.b32.xlu0 %v140, 1
    %v474 = vpop.permute.xlu0 %473
    %475 = vrot.lane.b32.xlu0 %v141, 1
    %v476 = vpop.permute.xlu0 %475
    %477 = vrot.lane.b32.xlu0 %v142, 1
    %v478 = vpop.permute.xlu0 %477
    %479 = vrot.lane.b32.xlu0 %v143, 1
    %v480 = vpop.permute.xlu0 %479
    %481 = vrot.lane.b32.xlu0 %v144, 1
    %v482 = vpop.permute.xlu0 %481
    %483 = vrot.lane.b32.xlu0 %v145, 1
    %v484 = vpop.permute.xlu0 %483
    %485 = vrot.lane.b32.xlu0 %v146, 1
    %v486 = vpop.permute.xlu0 %485
    %487 = vrot.lane.b32.xlu0 %v147, 1
    %v488 = vpop.permute.xlu0 %487
    %489 = vrot.lane.b32.xlu0 %v148, 1
    %v490 = vpop.permute.xlu0 %489
    %491 = vrot.lane.b32.xlu0 %v149, 1
    %v492 = vpop.permute.xlu0 %491
    %493 = vrot.lane.b32.xlu0 %v150, 1
    %v494 = vpop.permute.xlu0 %493
    %495 = vrot.lane.b32.xlu0 %v151, 1
    %v496 = vpop.permute.xlu0 %495
    %497 = vrot.lane.b32.xlu0 %v152, 1
    %v498 = vpop.permute.xlu0 %497
    %499 = vrot.lane.b32.xlu0 %v153, 1
    %v500 = vpop.permute.xlu0 %499
    %s501 = sld [smem:[#allocation2 + $0x3]]
    %v502 = vstv %s501
    %v503 = vmul.f32 %v502, %v450
    %v504 = vmul.f32 %v502, %v452
    %v505 = vmul.f32 %v502, %v454
    %v506 = vmul.f32 %v502, %v456
    %v507 = vmul.f32 %v502, %v458
    %v508 = vmul.f32 %v502, %v460
    %v509 = vmul.f32 %v502, %v462
    %v510 = vmul.f32 %v502, %v464
    %v511 = vmul.f32 %v502, %v466
    %v512 = vmul.f32 %v502, %v468
    %v513 = vmul.f32 %v502, %v470
    %v514 = vmul.f32 %v502, %v472
    %v515 = vmul.f32 %v502, %v474
    %v516 = vmul.f32 %v502, %v476
    %v517 = vmul.f32 %v502, %v478
    %v518 = vmul.f32 %v502, %v480
    %v519 = vmul.f32 %v502, %v482
    %v520 = vmul.f32 %v502, %v484
    %v521 = vmul.f32 %v502, %v486
    %v522 = vmul.f32 %v502, %v488
    %v523 = vmul.f32 %v502, %v490
    %v524 = vmul.f32 %v502, %v492
    %v525 = vmul.f32 %v502, %v494
    %v526 = vmul.f32 %v502, %v496
    %v527 = vmul.f32 %v502, %v498
    %v528 = vmul.f32 %v502, %v500
    %v529 = vadd.f32 %v423, %v503
    %v530 = vadd.f32 %v424, %v504
    %v531 = vadd.f32 %v425, %v505
    %v532 = vadd.f32 %v426, %v506
    %v533 = vadd.f32 %v427, %v507
    %v534 = vadd.f32 %v428, %v508
    %v535 = vadd.f32 %v429, %v509
    %v536 = vadd.f32 %v430, %v510
    %v537 = vadd.f32 %v431, %v511
    %v538 = vadd.f32 %v432, %v512
    %v539 = vadd.f32 %v433, %v513
    %v540 = vadd.f32 %v434, %v514
    %v541 = vadd.f32 %v435, %v515
    %v542 = vadd.f32 %v436, %v516
    %v543 = vadd.f32 %v437, %v517
    %v544 = vadd.f32 %v438, %v518
    %v545 = vadd.f32 %v439, %v519
    %v546 = vadd.f32 %v440, %v520
    %v547 = vadd.f32 %v441, %v521
    %v548 = vadd.f32 %v442, %v522
    %v549 = vadd.f32 %v443, %v523
    %v550 = vadd.f32 %v444, %v524
    %v551 = vadd.f32 %v445, %v525
    %v552 = vadd.f32 %v446, %v526
    %v553 = vadd.f32 %v447, %v527
    %v554 = vadd.f32 %v448, %v528
    %s555 = sld [smem:[#allocation2 + $0x4]]
    %v556 = vstv %s555
    %v557 = vmul.f32 %v556, %v128
    %v558 = vmul.f32 %v556, %v129
    %v559 = vmul.f32 %v556, %v130
    %v560 = vmul.f32 %v556, %v131
    %v561 = vmul.f32 %v556, %v132
    %v562 = vmul.f32 %v556, %v133
    %v563 = vmul.f32 %v556, %v134
    %v564 = vmul.f32 %v556, %v135
    %v565 = vmul.f32 %v556, %v136
    %v566 = vmul.f32 %v556, %v137
    %v567 = vmul.f32 %v556, %v138
    %v568 = vmul.f32 %v556, %v139
    %v569 = vmul.f32 %v556, %v140
    %v570 = vmul.f32 %v556, %v141
    %v571 = vmul.f32 %v556, %v142
    %v572 = vmul.f32 %v556, %v143
    %v573 = vmul.f32 %v556, %v144
    %v574 = vmul.f32 %v556, %v145
    %v575 = vmul.f32 %v556, %v146
    %v576 = vmul.f32 %v556, %v147
    %v577 = vmul.f32 %v556, %v148
    %v578 = vmul.f32 %v556, %v149
    %v579 = vmul.f32 %v556, %v150
    %v580 = vmul.f32 %v556, %v151
    %v581 = vmul.f32 %v556, %v152
    %v582 = vmul.f32 %v556, %v153
    %v583 = vadd.f32 %v529, %v557
    %v584 = vadd.f32 %v530, %v558
    %v585 = vadd.f32 %v531, %v559
    %v586 = vadd.f32 %v532, %v560
    %v587 = vadd.f32 %v533, %v561
    %v588 = vadd.f32 %v534, %v562
    %v589 = vadd.f32 %v535, %v563
    %v590 = vadd.f32 %v536, %v564
    %v591 = vadd.f32 %v537, %v565
    %v592 = vadd.f32 %v538, %v566
    %v593 = vadd.f32 %v539, %v567
    %v594 = vadd.f32 %v540, %v568
    %v595 = vadd.f32 %v541, %v569
    %v596 = vadd.f32 %v542, %v570
    %v597 = vadd.f32 %v543, %v571
    %v598 = vadd.f32 %v544, %v572
    %v599 = vadd.f32 %v545, %v573
    %v600 = vadd.f32 %v546, %v574
    %v601 = vadd.f32 %v547, %v575
    %v602 = vadd.f32 %v548, %v576
    %v603 = vadd.f32 %v549, %v577
    %v604 = vadd.f32 %v550, %v578
    %v605 = vadd.f32 %v551, %v579
    %v606 = vadd.f32 %v552, %v580
    %v607 = vadd.f32 %v553, %v581
    %v608 = vadd.f32 %v554, %v582
    %609 = vrot.lane.b32.xlu0 %v128, 127
    %v610 = vpop.permute.xlu0 %609
    %611 = vrot.lane.b32.xlu0 %v129, 127
    %v612 = vpop.permute.xlu0 %611
    %613 = vrot.lane.b32.xlu0 %v130, 127
    %v614 = vpop.permute.xlu0 %613
    %615 = vrot.lane.b32.xlu0 %v131, 127
    %v616 = vpop.permute.xlu0 %615
    %617 = vrot.lane.b32.xlu0 %v132, 127
    %v618 = vpop.permute.xlu0 %617
    %619 = vrot.lane.b32.xlu0 %v133, 127
    %v620 = vpop.permute.xlu0 %619
    %621 = vrot.lane.b32.xlu0 %v134, 127
    %v622 = vpop.permute.xlu0 %621
    %623 = vrot.lane.b32.xlu0 %v135, 127
    %v624 = vpop.permute.xlu0 %623
    %625 = vrot.lane.b32.xlu0 %v136, 127
    %v626 = vpop.permute.xlu0 %625
    %627 = vrot.lane.b32.xlu0 %v137, 127
    %v628 = vpop.permute.xlu0 %627
    %629 = vrot.lane.b32.xlu0 %v138, 127
    %v630 = vpop.permute.xlu0 %629
    %631 = vrot.lane.b32.xlu0 %v139, 127
    %v632 = vpop.permute.xlu0 %631
    %633 = vrot.lane.b32.xlu0 %v140, 127
    %v634 = vpop.permute.xlu0 %633
    %635 = vrot.lane.b32.xlu0 %v141, 127
    %v636 = vpop.permute.xlu0 %635
    %637 = vrot.lane.b32.xlu0 %v142, 127
    %v638 = vpop.permute.xlu0 %637
    %639 = vrot.lane.b32.xlu0 %v143, 127
    %v640 = vpop.permute.xlu0 %639
    %641 = vrot.lane.b32.xlu0 %v144, 127
    %v642 = vpop.permute.xlu0 %641
    %643 = vrot.lane.b32.xlu0 %v145, 127
    %v644 = vpop.permute.xlu0 %643
    %645 = vrot.lane.b32.xlu0 %v146, 127
    %v646 = vpop.permute.xlu0 %645
    %647 = vrot.lane.b32.xlu0 %v147, 127
    %v648 = vpop.permute.xlu0 %647
    %649 = vrot.lane.b32.xlu0 %v148, 127
    %v650 = vpop.permute.xlu0 %649
    %651 = vrot.lane.b32.xlu0 %v149, 127
    %v652 = vpop.permute.xlu0 %651
    %653 = vrot.lane.b32.xlu0 %v150, 127
    %v654 = vpop.permute.xlu0 %653
    %655 = vrot.lane.b32.xlu0 %v151, 127
    %v656 = vpop.permute.xlu0 %655
    %657 = vrot.lane.b32.xlu0 %v152, 127
    %v658 = vpop.permute.xlu0 %657
    %659 = vrot.lane.b32.xlu0 %v153, 127
    %v660 = vpop.permute.xlu0 %659
    %s661 = sld [smem:[#allocation2 + $0x5]]
    %v662 = vstv %s661
    %v663 = vmul.f32 %v662, %v610
    %v664 = vmul.f32 %v662, %v612
    %v665 = vmul.f32 %v662, %v614
    %v666 = vmul.f32 %v662, %v616
    %v667 = vmul.f32 %v662, %v618
    %v668 = vmul.f32 %v662, %v620
    %v669 = vmul.f32 %v662, %v622
    %v670 = vmul.f32 %v662, %v624
    %v671 = vmul.f32 %v662, %v626
    %v672 = vmul.f32 %v662, %v628
    %v673 = vmul.f32 %v662, %v630
    %v674 = vmul.f32 %v662, %v632
    %v675 = vmul.f32 %v662, %v634
    %v676 = vmul.f32 %v662, %v636
    %v677 = vmul.f32 %v662, %v638
    %v678 = vmul.f32 %v662, %v640
    %v679 = vmul.f32 %v662, %v642
    %v680 = vmul.f32 %v662, %v644
    %v681 = vmul.f32 %v662, %v646
    %v682 = vmul.f32 %v662, %v648
    %v683 = vmul.f32 %v662, %v650
    %v684 = vmul.f32 %v662, %v652
    %v685 = vmul.f32 %v662, %v654
    %v686 = vmul.f32 %v662, %v656
    %v687 = vmul.f32 %v662, %v658
    %v688 = vmul.f32 %v662, %v660
    %v689 = vadd.f32 %v583, %v663
    %v690 = vadd.f32 %v584, %v664
    %v691 = vadd.f32 %v585, %v665
    %v692 = vadd.f32 %v586, %v666
    %v693 = vadd.f32 %v587, %v667
    %v694 = vadd.f32 %v588, %v668
    %v695 = vadd.f32 %v589, %v669
    %v696 = vadd.f32 %v590, %v670
    %v697 = vadd.f32 %v591, %v671
    %v698 = vadd.f32 %v592, %v672
    %v699 = vadd.f32 %v593, %v673
    %v700 = vadd.f32 %v594, %v674
    %v701 = vadd.f32 %v595, %v675
    %v702 = vadd.f32 %v596, %v676
    %v703 = vadd.f32 %v597, %v677
    %v704 = vadd.f32 %v598, %v678
    %v705 = vadd.f32 %v599, %v679
    %v706 = vadd.f32 %v600, %v680
    %v707 = vadd.f32 %v601, %v681
    %v708 = vadd.f32 %v602, %v682
    %v709 = vadd.f32 %v603, %v683
    %v710 = vadd.f32 %v604, %v684
    %v711 = vadd.f32 %v605, %v685
    %v712 = vadd.f32 %v606, %v686
    %v713 = vadd.f32 %v607, %v687
    %v714 = vadd.f32 %v608, %v688
    %v715 = vrot.slane %v128, 1
    %v716 = vrot.slane %v129, 1
    %v717 = vrot.slane %v130, 1
    %v718 = vrot.slane %v131, 1
    %v719 = vrot.slane %v132, 1
    %v720 = vrot.slane %v133, 1
    %v721 = vrot.slane %v134, 1
    %v722 = vrot.slane %v135, 1
    %v723 = vrot.slane %v136, 1
    %v724 = vrot.slane %v137, 1
    %v725 = vrot.slane %v138, 1
    %v726 = vrot.slane %v139, 1
    %v727 = vrot.slane %v140, 1
    %v728 = vrot.slane %v141, 1
    %v729 = vrot.slane %v142, 1
    %v730 = vrot.slane %v143, 1
    %v731 = vrot.slane %v144, 1
    %v732 = vrot.slane %v145, 1
    %v733 = vrot.slane %v146, 1
    %v734 = vrot.slane %v147, 1
    %v735 = vrot.slane %v148, 1
    %v736 = vrot.slane %v149, 1
    %v737 = vrot.slane %v150, 1
    %v738 = vrot.slane %v151, 1
    %v739 = vrot.slane %v152, 1
    %v740 = vrot.slane %v153, 1
    %vm741 = vcmp.lt.s32.totalorder %v181, 7
    %v742 = vsel %vm741, %v739, %v740
    %v743 = vsel %vm741, %v738, %v739
    %v744 = vsel %vm741, %v737, %v738
    %v745 = vsel %vm741, %v736, %v737
    %v746 = vsel %vm741, %v735, %v736
    %v747 = vsel %vm741, %v734, %v735
    %v748 = vsel %vm741, %v733, %v734
    %v749 = vsel %vm741, %v732, %v733
    %v750 = vsel %vm741, %v731, %v732
    %v751 = vsel %vm741, %v730, %v731
    %v752 = vsel %vm741, %v729, %v730
    %v753 = vsel %vm741, %v728, %v729
    %v754 = vsel %vm741, %v727, %v728
    %v755 = vsel %vm741, %v726, %v727
    %v756 = vsel %vm741, %v725, %v726
    %v757 = vsel %vm741, %v724, %v725
    %v758 = vsel %vm741, %v723, %v724
    %v759 = vsel %vm741, %v722, %v723
    %v760 = vsel %vm741, %v721, %v722
    %v761 = vsel %vm741, %v720, %v721
    %v762 = vsel %vm741, %v719, %v720
    %v763 = vsel %vm741, %v718, %v719
    %v764 = vsel %vm741, %v717, %v718
    %v765 = vsel %vm741, %v716, %v717
    %v766 = vsel %vm741, %v715, %v716
    %v767 = vsel %vm741, %v740, %v715
    %768 = vrot.lane.b32.xlu0 %v766, 1
    %v769 = vpop.permute.xlu0 %768
    %770 = vrot.lane.b32.xlu0 %v765, 1
    %v771 = vpop.permute.xlu0 %770
    %772 = vrot.lane.b32.xlu0 %v764, 1
    %v773 = vpop.permute.xlu0 %772
    %774 = vrot.lane.b32.xlu0 %v763, 1
    %v775 = vpop.permute.xlu0 %774
    %776 = vrot.lane.b32.xlu0 %v762, 1
    %v777 = vpop.permute.xlu0 %776
    %778 = vrot.lane.b32.xlu0 %v761, 1
    %v779 = vpop.permute.xlu0 %778
    %780 = vrot.lane.b32.xlu0 %v760, 1
    %v781 = vpop.permute.xlu0 %780
    %782 = vrot.lane.b32.xlu0 %v759, 1
    %v783 = vpop.permute.xlu0 %782
    %784 = vrot.lane.b32.xlu0 %v758, 1
    %v785 = vpop.permute.xlu0 %784
    %786 = vrot.lane.b32.xlu0 %v757, 1
    %v787 = vpop.permute.xlu0 %786
    %788 = vrot.lane.b32.xlu0 %v756, 1
    %v789 = vpop.permute.xlu0 %788
    %790 = vrot.lane.b32.xlu0 %v755, 1
    %v791 = vpop.permute.xlu0 %790
    %792 = vrot.lane.b32.xlu0 %v754, 1
    %v793 = vpop.permute.xlu0 %792
    %794 = vrot.lane.b32.xlu0 %v753, 1
    %v795 = vpop.permute.xlu0 %794
    %796 = vrot.lane.b32.xlu0 %v752, 1
    %v797 = vpop.permute.xlu0 %796
    %798 = vrot.lane.b32.xlu0 %v751, 1
    %v799 = vpop.permute.xlu0 %798
    %800 = vrot.lane.b32.xlu0 %v750, 1
    %v801 = vpop.permute.xlu0 %800
    %802 = vrot.lane.b32.xlu0 %v749, 1
    %v803 = vpop.permute.xlu0 %802
    %804 = vrot.lane.b32.xlu0 %v748, 1
    %v805 = vpop.permute.xlu0 %804
    %806 = vrot.lane.b32.xlu0 %v747, 1
    %v807 = vpop.permute.xlu0 %806
    %808 = vrot.lane.b32.xlu0 %v746, 1
    %v809 = vpop.permute.xlu0 %808
    %810 = vrot.lane.b32.xlu0 %v745, 1
    %v811 = vpop.permute.xlu0 %810
    %812 = vrot.lane.b32.xlu0 %v744, 1
    %v813 = vpop.permute.xlu0 %812
    %814 = vrot.lane.b32.xlu0 %v743, 1
    %v815 = vpop.permute.xlu0 %814
    %816 = vrot.lane.b32.xlu0 %v742, 1
    %v817 = vpop.permute.xlu0 %816
    %818 = vrot.lane.b32.xlu0 %v767, 1
    %v819 = vpop.permute.xlu0 %818
    %s820 = sld [smem:[#allocation2 + $0x6]]
    %v821 = vstv %s820
    %v822 = vmul.f32 %v821, %v769
    %v823 = vmul.f32 %v821, %v771
    %v824 = vmul.f32 %v821, %v773
    %v825 = vmul.f32 %v821, %v775
    %v826 = vmul.f32 %v821, %v777
    %v827 = vmul.f32 %v821, %v779
    %v828 = vmul.f32 %v821, %v781
    %v829 = vmul.f32 %v821, %v783
    %v830 = vmul.f32 %v821, %v785
    %v831 = vmul.f32 %v821, %v787
    %v832 = vmul.f32 %v821, %v789
    %v833 = vmul.f32 %v821, %v791
    %v834 = vmul.f32 %v821, %v793
    %v835 = vmul.f32 %v821, %v795
    %v836 = vmul.f32 %v821, %v797
    %v837 = vmul.f32 %v821, %v799
    %v838 = vmul.f32 %v821, %v801
    %v839 = vmul.f32 %v821, %v803
    %v840 = vmul.f32 %v821, %v805
    %v841 = vmul.f32 %v821, %v807
    %v842 = vmul.f32 %v821, %v809
    %v843 = vmul.f32 %v821, %v811
    %v844 = vmul.f32 %v821, %v813
    %v845 = vmul.f32 %v821, %v815
    %v846 = vmul.f32 %v821, %v817
    %v847 = vmul.f32 %v821, %v819
    %v848 = vadd.f32 %v689, %v822
    %v849 = vadd.f32 %v690, %v823
    %v850 = vadd.f32 %v691, %v824
    %v851 = vadd.f32 %v692, %v825
    %v852 = vadd.f32 %v693, %v826
    %v853 = vadd.f32 %v694, %v827
    %v854 = vadd.f32 %v695, %v828
    %v855 = vadd.f32 %v696, %v829
    %v856 = vadd.f32 %v697, %v830
    %v857 = vadd.f32 %v698, %v831
    %v858 = vadd.f32 %v699, %v832
    %v859 = vadd.f32 %v700, %v833
    %v860 = vadd.f32 %v701, %v834
    %v861 = vadd.f32 %v702, %v835
    %v862 = vadd.f32 %v703, %v836
    %v863 = vadd.f32 %v704, %v837
    %v864 = vadd.f32 %v705, %v838
    %v865 = vadd.f32 %v706, %v839
    %v866 = vadd.f32 %v707, %v840
    %v867 = vadd.f32 %v708, %v841
    %v868 = vadd.f32 %v709, %v842
    %v869 = vadd.f32 %v710, %v843
    %v870 = vadd.f32 %v711, %v844
    %v871 = vadd.f32 %v712, %v845
    %v872 = vadd.f32 %v713, %v846
    %v873 = vadd.f32 %v714, %v847
    %s874 = sld [smem:[#allocation2 + $0x7]]
    %v875 = vstv %s874
    %v876 = vmul.f32 %v875, %v766
    %v877 = vmul.f32 %v875, %v765
    %v878 = vmul.f32 %v875, %v764
    %v879 = vmul.f32 %v875, %v763
    %v880 = vmul.f32 %v875, %v762
    %v881 = vmul.f32 %v875, %v761
    %v882 = vmul.f32 %v875, %v760
    %v883 = vmul.f32 %v875, %v759
    %v884 = vmul.f32 %v875, %v758
    %v885 = vmul.f32 %v875, %v757
    %v886 = vmul.f32 %v875, %v756
    %v887 = vmul.f32 %v875, %v755
    %v888 = vmul.f32 %v875, %v754
    %v889 = vmul.f32 %v875, %v753
    %v890 = vmul.f32 %v875, %v752
    %v891 = vmul.f32 %v875, %v751
    %v892 = vmul.f32 %v875, %v750
    %v893 = vmul.f32 %v875, %v749
    %v894 = vmul.f32 %v875, %v748
    %v895 = vmul.f32 %v875, %v747
    %v896 = vmul.f32 %v875, %v746
    %v897 = vmul.f32 %v875, %v745
    %v898 = vmul.f32 %v875, %v744
    %v899 = vmul.f32 %v875, %v743
    %v900 = vmul.f32 %v875, %v742
    %v901 = vmul.f32 %v875, %v767
    %v902 = vadd.f32 %v848, %v876
    %v903 = vadd.f32 %v849, %v877
    %v904 = vadd.f32 %v850, %v878
    %v905 = vadd.f32 %v851, %v879
    %v906 = vadd.f32 %v852, %v880
    %v907 = vadd.f32 %v853, %v881
    %v908 = vadd.f32 %v854, %v882
    %v909 = vadd.f32 %v855, %v883
    %v910 = vadd.f32 %v856, %v884
    %v911 = vadd.f32 %v857, %v885
    %v912 = vadd.f32 %v858, %v886
    %v913 = vadd.f32 %v859, %v887
    %v914 = vadd.f32 %v860, %v888
    %v915 = vadd.f32 %v861, %v889
    %v916 = vadd.f32 %v862, %v890
    %v917 = vadd.f32 %v863, %v891
    %v918 = vadd.f32 %v864, %v892
    %v919 = vadd.f32 %v865, %v893
    %v920 = vadd.f32 %v866, %v894
    %v921 = vadd.f32 %v867, %v895
    %v922 = vadd.f32 %v868, %v896
    %v923 = vadd.f32 %v869, %v897
    %v924 = vadd.f32 %v870, %v898
    %v925 = vadd.f32 %v871, %v899
    %v926 = vadd.f32 %v872, %v900
    %v927 = vadd.f32 %v873, %v901
    %928 = vrot.lane.b32.xlu0 %v766, 127
    %v929 = vpop.permute.xlu0 %928
    %930 = vrot.lane.b32.xlu0 %v765, 127
    %v931 = vpop.permute.xlu0 %930
    %932 = vrot.lane.b32.xlu0 %v764, 127
    %v933 = vpop.permute.xlu0 %932
    %934 = vrot.lane.b32.xlu0 %v763, 127
    %v935 = vpop.permute.xlu0 %934
    %936 = vrot.lane.b32.xlu0 %v762, 127
    %v937 = vpop.permute.xlu0 %936
    %938 = vrot.lane.b32.xlu0 %v761, 127
    %v939 = vpop.permute.xlu0 %938
    %940 = vrot.lane.b32.xlu0 %v760, 127
    %v941 = vpop.permute.xlu0 %940
    %942 = vrot.lane.b32.xlu0 %v759, 127
    %v943 = vpop.permute.xlu0 %942
    %944 = vrot.lane.b32.xlu0 %v758, 127
    %v945 = vpop.permute.xlu0 %944
    %946 = vrot.lane.b32.xlu0 %v757, 127
    %v947 = vpop.permute.xlu0 %946
    %948 = vrot.lane.b32.xlu0 %v756, 127
    %v949 = vpop.permute.xlu0 %948
    %950 = vrot.lane.b32.xlu0 %v755, 127
    %v951 = vpop.permute.xlu0 %950
    %952 = vrot.lane.b32.xlu0 %v754, 127
    %v953 = vpop.permute.xlu0 %952
    %954 = vrot.lane.b32.xlu0 %v753, 127
    %v955 = vpop.permute.xlu0 %954
    %956 = vrot.lane.b32.xlu0 %v752, 127
    %v957 = vpop.permute.xlu0 %956
    %958 = vrot.lane.b32.xlu0 %v751, 127
    %v959 = vpop.permute.xlu0 %958
    %960 = vrot.lane.b32.xlu0 %v750, 127
    %v961 = vpop.permute.xlu0 %960
    %962 = vrot.lane.b32.xlu0 %v749, 127
    %v963 = vpop.permute.xlu0 %962
    %964 = vrot.lane.b32.xlu0 %v748, 127
    %v965 = vpop.permute.xlu0 %964
    %966 = vrot.lane.b32.xlu0 %v747, 127
    %v967 = vpop.permute.xlu0 %966
    %968 = vrot.lane.b32.xlu0 %v746, 127
    %v969 = vpop.permute.xlu0 %968
    %970 = vrot.lane.b32.xlu0 %v745, 127
    %v971 = vpop.permute.xlu0 %970
    %972 = vrot.lane.b32.xlu0 %v744, 127
    %v973 = vpop.permute.xlu0 %972
    %974 = vrot.lane.b32.xlu0 %v743, 127
    %v975 = vpop.permute.xlu0 %974
    %976 = vrot.lane.b32.xlu0 %v742, 127
    %v977 = vpop.permute.xlu0 %976
    %978 = vrot.lane.b32.xlu0 %v767, 127
    %v979 = vpop.permute.xlu0 %978
    %s980 = sld [smem:[#allocation2 + $0x8]]
    %v981 = vstv %s980
    %v982 = vmul.f32 %v981, %v929
    %v983 = vmul.f32 %v981, %v931
    %v984 = vmul.f32 %v981, %v933
    %v985 = vmul.f32 %v981, %v935
    %v986 = vmul.f32 %v981, %v937
    %v987 = vmul.f32 %v981, %v939
    %v988 = vmul.f32 %v981, %v941
    %v989 = vmul.f32 %v981, %v943
    %v990 = vmul.f32 %v981, %v945
    %v991 = vmul.f32 %v981, %v947
    %v992 = vmul.f32 %v981, %v949
    %v993 = vmul.f32 %v981, %v951
    %v994 = vmul.f32 %v981, %v953
    %v995 = vmul.f32 %v981, %v955
    %v996 = vmul.f32 %v981, %v957
    %v997 = vmul.f32 %v981, %v959
    %v998 = vmul.f32 %v981, %v961
    %v999 = vmul.f32 %v981, %v963
    %v1000 = vmul.f32 %v981, %v965
    %v1001 = vmul.f32 %v981, %v967
    %v1002 = vmul.f32 %v981, %v969
    %v1003 = vmul.f32 %v981, %v971
    %v1004 = vmul.f32 %v981, %v973
    %v1005 = vmul.f32 %v981, %v975
    %v1006 = vmul.f32 %v981, %v977
    %v1007 = vmul.f32 %v981, %v979
    %v1008 = vadd.f32 %v902, %v982
    %v1009 = vadd.f32 %v903, %v983
    %v1010 = vadd.f32 %v904, %v984
    %v1011 = vadd.f32 %v905, %v985
    %v1012 = vadd.f32 %v906, %v986
    %v1013 = vadd.f32 %v907, %v987
    %v1014 = vadd.f32 %v908, %v988
    %v1015 = vadd.f32 %v909, %v989
    %v1016 = vadd.f32 %v910, %v990
    %v1017 = vadd.f32 %v911, %v991
    %v1018 = vadd.f32 %v912, %v992
    %v1019 = vadd.f32 %v913, %v993
    %v1020 = vadd.f32 %v914, %v994
    %v1021 = vadd.f32 %v915, %v995
    %v1022 = vadd.f32 %v916, %v996
    %v1023 = vadd.f32 %v917, %v997
    %v1024 = vadd.f32 %v918, %v998
    %v1025 = vadd.f32 %v919, %v999
    %v1026 = vadd.f32 %v920, %v1000
    %v1027 = vadd.f32 %v921, %v1001
    %v1028 = vadd.f32 %v922, %v1002
    %v1029 = vadd.f32 %v923, %v1003
    %v1030 = vadd.f32 %v924, %v1004
    %v1031 = vadd.f32 %v925, %v1005
    %v1032 = vadd.f32 %v926, %v1006
    %v1033 = vadd.f32 %v927, %v1007
    %v1034 = vmax.f32 %v1008, 0.0
    %v1035 = vmax.f32 %v1009, 0.0
    %v1036 = vmax.f32 %v1010, 0.0
    %v1037 = vmax.f32 %v1011, 0.0
    %v1038 = vmax.f32 %v1012, 0.0
    %v1039 = vmax.f32 %v1013, 0.0
    %v1040 = vmax.f32 %v1014, 0.0
    %v1041 = vmax.f32 %v1015, 0.0
    %v1042 = vmax.f32 %v1016, 0.0
    %v1043 = vmax.f32 %v1017, 0.0
    %v1044 = vmax.f32 %v1018, 0.0
    %v1045 = vmax.f32 %v1019, 0.0
    %v1046 = vmax.f32 %v1020, 0.0
    %v1047 = vmax.f32 %v1021, 0.0
    %v1048 = vmax.f32 %v1022, 0.0
    %v1049 = vmax.f32 %v1023, 0.0
    %v1050 = vmax.f32 %v1024, 0.0
    %v1051 = vmax.f32 %v1025, 0.0
    %v1052 = vmax.f32 %v1026, 0.0
    %v1053 = vmax.f32 %v1027, 0.0
    %v1054 = vmax.f32 %v1028, 0.0
    %v1055 = vmax.f32 %v1029, 0.0
    %v1056 = vmax.f32 %v1030, 0.0
    %v1057 = vmax.f32 %v1031, 0.0
    %v1058 = vmax.f32 %v1032, 0.0
    %v1059 = vmax.f32 %v1033, 0.0
    %1060 = vst [vmem:[%s4] sm:$0xff] %v1034
    %1061 = vst [vmem:[%s4 + $0x8] sm:$0xff] %v1035
    %1062 = vst [vmem:[%s4 + $0x10] sm:$0xff] %v1036
    %1063 = vst [vmem:[%s4 + $0x18] sm:$0xff] %v1037
    %1064 = vst [vmem:[%s4 + $0x20] sm:$0xff] %v1038
    %1065 = vst [vmem:[%s4 + $0x28] sm:$0xff] %v1039
    %1066 = vst [vmem:[%s4 + $0x30] sm:$0xff] %v1040
    %1067 = vst [vmem:[%s4 + $0x38] sm:$0xff] %v1041
    %1068 = vst [vmem:[%s4 + $0x40] sm:$0xff] %v1042
    %1069 = vst [vmem:[%s4 + $0x48] sm:$0xff] %v1043
    %1070 = vst [vmem:[%s4 + $0x50] sm:$0xff] %v1044
    %1071 = vst [vmem:[%s4 + $0x58] sm:$0xff] %v1045
    %1072 = vst [vmem:[%s4 + $0x60] sm:$0xff] %v1046
    %1073 = vst [vmem:[%s4 + $0x68] sm:$0xff] %v1047
    %1074 = vst [vmem:[%s4 + $0x70] sm:$0xff] %v1048
    %1075 = vst [vmem:[%s4 + $0x78] sm:$0xff] %v1049
    %1076 = vst [vmem:[%s4 + $0x80] sm:$0xff] %v1050
    %1077 = vst [vmem:[%s4 + $0x88] sm:$0xff] %v1051
    %1078 = vst [vmem:[%s4 + $0x90] sm:$0xff] %v1052
    %1079 = vst [vmem:[%s4 + $0x98] sm:$0xff] %v1053
    %1080 = vst [vmem:[%s4 + $0xa0] sm:$0xff] %v1054
    %1081 = vst [vmem:[%s4 + $0xa8] sm:$0xff] %v1055
    %1082 = vst [vmem:[%s4 + $0xb0] sm:$0xff] %v1056
    %1083 = vst [vmem:[%s4 + $0xb8] sm:$0xff] %v1057
    %1084 = vst [vmem:[%s4 + $0xc0] sm:$0xff] %v1058
    %1085 = vst [vmem:[%s4 + $0xc8] sm:$0xff] %v1059
    // Predicated region
    $region22: #{decoder_forward.1} parent=1 // pred_check
      _
    $region23: #{decoder_forward.1} parent=1 // pred_check_branch
      %1087 = sbr.rel (0) target = $region25
    $region24: #{decoder_forward.1} parent=1 // pred_region
      _
    $region25: #{decoder_forward.1} parent=1 // pred_fallthru
      _
    // Predicated region
    $region26: #{decoder_forward.1} parent=1 // pred_check
      _
    $region27: #{decoder_forward.1} parent=1 // pred_check_branch
      %1089 = sbr.rel (0) target = $region29
    $region28: #{decoder_forward.1} parent=1 // pred_region
      _
    $region29: #{decoder_forward.1} parent=1 // pred_fallthru
      _
    %1090 = vsyncpa [#allocation3], 1

</llo_original>
